<compile_context>
chip_gen: v7x
topology: tpu7x:2x2x1
jax: 0.10.0
libtpu: 0.0.40
codegen_flags: <defaults>
</compile_context>

<pallas_src>
import functools
import math

import numpy as np
import jax
import jax.numpy as jnp
from jax import lax
from jax.experimental import pallas as pl
from jax.experimental.pallas import tpu as pltpu

NUM_GROUPS = 32
EPS = 1e-6


def _groupnorm_kernel(x_ref, w_ref, b_ref, m_ref, o_ref, *, cg, eps):
    """x_ref/o_ref: (rows, HW). w_ref/b_ref: (rows, 1). m_ref: (rows, 2*cg-1)."""
    rows, hw = x_ref.shape
    inv_cnt = 1.0 / float(cg * hw)

    x = x_ref[...].astype(jnp.float32)                      # (rows, hw)

    # Per-channel partial moments: lane reduces (XLU), single pass over x.
    s1 = jnp.sum(x, axis=-1, keepdims=True)                 # (rows, 1)
    s2 = jnp.sum(x * x, axis=-1, keepdims=True)             # (rows, 1)
    s12 = jnp.concatenate([s1, s2], axis=1)                 # (rows, 2)

    # Within-group combine + broadcast back to rows in one shot: each row
    # accumulates the partial sums of the cg rows of its own group via tiny
    # sublane rolls gated by the precomputed 0/1 mask (groups never straddle
    # a block because rows % cg == 0).
    m = m_ref[...]                                          # (rows, 2*cg-1)
    acc = None
    for t, d in enumerate(range(-(cg - 1), cg)):
        rolled = s12 if d == 0 else pltpu.roll(s12, shift=(-d) % rows, axis=0)
        term = m[:, t:t + 1] * rolled
        acc = term if acc is None else acc + term
    g1 = acc[:, 0:1]                                        # (rows, 1) group sum
    g2 = acc[:, 1:2]                                        # (rows, 1) group sum sq

    # Single-pass moments in f32 (clamped for safety), matching GroupNorm.
    mean = g1 * inv_cnt
    var = jnp.maximum(g2 * inv_cnt - mean * mean, 0.0)
    inv = lax.rsqrt(var + eps)                              # (rows, 1)

    # Fused affine: o = x * scale + shift; per-row scale/shift lane-broadcast.
    w = w_ref[...].astype(jnp.float32)
    b = b_ref[...].astype(jnp.float32)
    scale = w * inv
    shift = b - mean * scale
    o_ref[...] = (x * scale + shift).astype(o_ref.dtype)


def _vmem_capacity_bytes():
    try:
        info = pltpu.get_tpu_info()
        cap = getattr(info, "vmem_capacity_bytes", None)
        if cap:
            return int(cap)
    except Exception:
        pass
    return 64 * 2**20  # conservative (v7x-sized) default


def _pick_rows_per_block(total_rows, hw, cg, target_f32_bytes):
    """Largest row count that divides total_rows, keeps whole groups (mult of
    cg), keeps the sublane dim a multiple of 8, stays under the f32 block
    budget, and leaves >= 2 grid steps (both v7x TensorCores get work)."""
    step = (cg * 8) // math.gcd(cg, 8)        # lcm(cg, 8); always divides C
    budget_rows = max(target_f32_bytes // (4 * hw), 1)
    rmax = min(budget_rows, total_rows // 2)
    rb = step  # fallback: may exceed the budget for very large H*W
    # TODO(synk): for very large Cg*H*W (one group bigger than the budget) add
    # a streaming sum/sum-of-squares pass over an inner spatial grid axis
    # instead of a single oversized block.
    r = rmax - rmax % step
    while r >= step:
        if total_rows % r == 0:
            rb = r
            break
        r -= step
    return rb


def group_norm(x, weight, bias, num_groups=NUM_GROUPS, eps=EPS):
    """x: (N, C, H, W) NCHW.  weight, bias: (C,).  Returns (N, C, H, W)."""
    N, C, H, W = x.shape
    G = num_groups
    assert C % G == 0, "channels must be divisible by num_groups"
    cg = C // G
    HW = H * W
    R = N * C

    # Free, contiguous views; spatial stays on the lane axis.
    # TODO(synk): if HW is not a multiple of 128 the big stores are
    # lane-masked; a flattened (G, Cg*HW) layout with a precomputed one-hot
    # broadcast operand would restore lane density for such shapes.
    x2 = x.reshape(R, HW)
    w2 = jnp.broadcast_to(weight.reshape(1, C), (N, C)).reshape(R, 1)
    b2 = jnp.broadcast_to(bias.reshape(1, C), (N, C)).reshape(R, 1)

    # Per-generation block sizing: ~8 MiB f32 blocks on 128-MiB-VMEM parts
    # (v5e/v6e), ~4 MiB on v7x (64 MiB VMEM per TensorCore).
    vmem_cap = _vmem_capacity_bytes()
    target_f32 = (8 if vmem_cap >= 100 * 2**20 else 4) * 2**20
    rb = _pick_rows_per_block(R, HW, cg, target_f32)
    n_blk = R // rb

    # Tiny resident 0/1 mask gating the (2*cg-1) sublane rolls of the
    # within-group combine; identical for every block since rb % cg == 0.
    p = np.arange(rb) % cg
    offs = np.arange(-(cg - 1), cg)
    mask_np = ((offs[None, :] >= -p[:, None]) &
               (offs[None, :] <= (cg - 1) - p[:, None])).astype(np.float32)
    mask = jnp.asarray(mask_np)                              # (rb, 2*cg-1)

    # Scoped-VMEM request: double-buffered I/O + f32 temporaries + resident
    # mask, clamped safely below the physical per-core VMEM capacity.
    blk_io = rb * HW * x.dtype.itemsize
    est = 4 * blk_io + 12 * rb * HW + 2 * mask.size * 4 + (2 << 20)
    cap = min(int(vmem_cap * 0.8), 100 * 2**20)
    vmem_lim = int(min(cap, max(int(est * 1.25), 32 * 2**20)))

    kernel = functools.partial(_groupnorm_kernel, cg=cg, eps=eps)

    out = pl.pallas_call(
        kernel,
        out_shape=jax.ShapeDtypeStruct((R, HW), x.dtype),
        grid_spec=pltpu.PrefetchScalarGridSpec(
            num_scalar_prefetch=0,
            grid=(n_blk,),
            in_specs=[
                pl.BlockSpec((rb, HW), lambda i: (i, 0)),
                pl.BlockSpec((rb, 1), lambda i: (i, 0)),
                pl.BlockSpec((rb, 1), lambda i: (i, 0)),
                pl.BlockSpec((rb, 2 * cg - 1), lambda i: (0, 0)),  # resident
            ],
            out_specs=pl.BlockSpec((rb, HW), lambda i: (i, 0)),
        ),
        compiler_params=pltpu.CompilerParams(
            dimension_semantics=("parallel",),
            vmem_limit_bytes=vmem_lim,
        ),
    )(x2, w2, b2, mask)

    return out.reshape(N, C, H, W)


def group_norm_ref(x, weight, bias, num_groups=NUM_GROUPS, eps=EPS):
    """Plain-JAX reference matching torch.nn.GroupNorm semantics."""
    N, C, H, W = x.shape
    G = num_groups
    xg = x.reshape(N, G, -1).astype(jnp.float32)
    mean = jnp.mean(xg, axis=-1, keepdims=True)
    var = jnp.mean(jnp.square(xg - mean), axis=-1, keepdims=True)
    xn = ((xg - mean) / jnp.sqrt(var + eps)).reshape(N, C, H, W)
    return (xn * weight[None, :, None, None] + bias[None, :, None, None]).astype(x.dtype)


if __name__ == "__main__":
    key = jax.random.PRNGKey(0)
    kx, kw, kb = jax.random.split(key, 3)

    # channels must be a multiple of num_groups=32
    N, C, H, W = 2, 64, 16, 16
    x = jax.random.normal(kx, (N, C, H, W), dtype=jnp.float32)

    # random affine params to exercise the per-channel scale/shift path
    weight = 1.0 + 0.1 * jax.random.normal(kw, (C,), dtype=jnp.float32)
    bias = 0.1 * jax.random.normal(kb, (C,), dtype=jnp.float32)

    out = jax.block_until_ready(group_norm(x, weight, bias))
    ref = group_norm_ref(x, weight, bias)

    assert out.shape == (N, C, H, W)
    err = float(jnp.max(jnp.abs(out - ref)))
    assert jnp.allclose(out, ref, atol=2e-5, rtol=2e-5), err

    print("KERNEL_OK")
</pallas_src>

<mosaic_0001>
module attributes {stable_mosaic.version = 11 : i64} {
  func.func @_groupnorm_kernel(%arg0: i32, %arg1: memref<64x256xf32, #tpu.memory_space<vmem>>, %arg2: memref<64x1xf32, #tpu.memory_space<vmem>>, %arg3: memref<64x1xf32, #tpu.memory_space<vmem>>, %arg4: memref<64x3xf32, #tpu.memory_space<vmem>>, %arg5: memref<64x256xf32, #tpu.memory_space<vmem>>) attributes {dimension_semantics = [#tpu.dimension_semantics<parallel>], iteration_bounds = array<i64: 2>, scalar_prefetch = 0 : i64, scratch_operands = 0 : i64, tpu.core_type = #tpu.core_type<tc>, window_params = [{transform_indices = @transform_0, window_bounds = array<i64: 64, 256>}, {transform_indices = @transform_1, window_bounds = array<i64: 64, 1>}, {transform_indices = @transform_2, window_bounds = array<i64: 64, 1>}, {pipeline_mode = #tpu.pipeline_mode<synchronous>, transform_indices = @transform_3, window_bounds = array<i64: 64, 3>}, {transform_indices = @transform_4, window_bounds = array<i64: 64, 256>}]} {
    %c0 = arith.constant 0 : index
    %c0_0 = arith.constant 0 : index
    %0 = vector.load %arg1[%c0, %c0_0] : memref<64x256xf32, #tpu.memory_space<vmem>>, vector<64x256xf32>
    %cst = arith.constant dense<0.000000e+00> : vector<64xf32>
    %1 = vector.multi_reduction <add>, %0, %cst [1] : vector<64x256xf32> to vector<64xf32>
    %2 = vector.shape_cast %1 : vector<64xf32> to vector<64x1xf32>
    %3 = arith.mulf %0, %0 : vector<64x256xf32>
    %cst_1 = arith.constant dense<0.000000e+00> : vector<64xf32>
    %4 = vector.multi_reduction <add>, %3, %cst_1 [1] : vector<64x256xf32> to vector<64xf32>
    %5 = vector.shape_cast %4 : vector<64xf32> to vector<64x1xf32>
    %6 = tpu.concatenate %2, %5 in 1 : vector<64x1xf32>, vector<64x1xf32> -> vector<64x2xf32>
    %c0_2 = arith.constant 0 : index
    %c0_3 = arith.constant 0 : index
    %7 = vector.load %arg4[%c0_2, %c0_3] : memref<64x3xf32, #tpu.memory_space<vmem>>, vector<64x3xf32>
    %c1_i32 = arith.constant 1 : i32
    %8 = tpu.dynamic_rotate %6 by %c1_i32 dim 0 : vector<64x2xf32>, i32 -> vector<64x2xf32>
    %9 = vector.extract_strided_slice %7 {offsets = [0, 0], sizes = [64, 1], strides = [1, 1]} : vector<64x3xf32> to vector<64x1xf32>
    %10 = vector.broadcast %9 : vector<64x1xf32> to vector<64x2xf32>
    %11 = arith.mulf %10, %8 : vector<64x2xf32>
    %12 = vector.extract_strided_slice %7 {offsets = [0, 1], sizes = [64, 1], strides = [1, 1]} : vector<64x3xf32> to vector<64x1xf32>
    %13 = vector.broadcast %12 : vector<64x1xf32> to vector<64x2xf32>
    %14 = arith.mulf %13, %6 : vector<64x2xf32>
    %15 = arith.addf %11, %14 : vector<64x2xf32>
    %c63_i32 = arith.constant 63 : i32
    %16 = tpu.dynamic_rotate %6 by %c63_i32 dim 0 : vector<64x2xf32>, i32 -> vector<64x2xf32>
    %17 = vector.extract_strided_slice %7 {offsets = [0, 2], sizes = [64, 1], strides = [1, 1]} : vector<64x3xf32> to vector<64x1xf32>
    %18 = vector.broadcast %17 : vector<64x1xf32> to vector<64x2xf32>
    %19 = arith.mulf %18, %16 : vector<64x2xf32>
    %20 = arith.addf %15, %19 : vector<64x2xf32>
    %21 = vector.extract_strided_slice %20 {offsets = [0, 0], sizes = [64, 1], strides = [1, 1]} : vector<64x2xf32> to vector<64x1xf32>
    %22 = vector.extract_strided_slice %20 {offsets = [0, 1], sizes = [64, 1], strides = [1, 1]} : vector<64x2xf32> to vector<64x1xf32>
    %cst_4 = arith.constant 0.001953125 : f32
    %23 = vector.broadcast %cst_4 : f32 to vector<64x1xf32>
    %24 = arith.mulf %21, %23 : vector<64x1xf32>
    %cst_5 = arith.constant 0.001953125 : f32
    %25 = vector.broadcast %cst_5 : f32 to vector<64x1xf32>
    %26 = arith.mulf %22, %25 : vector<64x1xf32>
    %27 = arith.mulf %24, %24 : vector<64x1xf32>
    %28 = arith.subf %26, %27 : vector<64x1xf32>
    %cst_6 = arith.constant 0.000000e+00 : f32
    %29 = vector.broadcast %cst_6 : f32 to vector<64x1xf32>
    %30 = arith.maximumf %28, %29 : vector<64x1xf32>
    %cst_7 = arith.constant 9.99999997E-7 : f32
    %31 = vector.broadcast %cst_7 : f32 to vector<64x1xf32>
    %32 = arith.addf %30, %31 : vector<64x1xf32>
    %33 = math.rsqrt %32 : vector<64x1xf32>
    %c0_8 = arith.constant 0 : index
    %c0_9 = arith.constant 0 : index
    %34 = vector.load %arg2[%c0_8, %c0_9] : memref<64x1xf32, #tpu.memory_space<vmem>>, vector<64x1xf32>
    %c0_10 = arith.constant 0 : index
    %c0_11 = arith.constant 0 : index
    %35 = vector.load %arg3[%c0_10, %c0_11] : memref<64x1xf32, #tpu.memory_space<vmem>>, vector<64x1xf32>
    %36 = arith.mulf %34, %33 : vector<64x1xf32>
    %37 = arith.mulf %24, %36 : vector<64x1xf32>
    %38 = arith.subf %35, %37 : vector<64x1xf32>
    %39 = vector.broadcast %36 : vector<64x1xf32> to vector<64x256xf32>
    %40 = arith.mulf %0, %39 : vector<64x256xf32>
    %41 = vector.broadcast %38 : vector<64x1xf32> to vector<64x256xf32>
    %42 = arith.addf %40, %41 : vector<64x256xf32>
    %c0_12 = arith.constant 0 : index
    %c0_13 = arith.constant 0 : index
    %43 = vector.load %arg5[%c0_12, %c0_13] : memref<64x256xf32, #tpu.memory_space<vmem>>, vector<64x256xf32>
    tpu.vector_store %arg5[%c0_12, %c0_13], %42 {strides = array<i32>} : memref<64x256xf32, #tpu.memory_space<vmem>>, vector<64x256xf32>,
    return
  }
  func.func @transform_0(%arg0: i32) -> (i32, i32) {
    %c0_i32 = arith.constant 0 : i32
    %c0_i32_0 = arith.constant 0 : i32
    return %arg0, %c0_i32 : i32, i32
  }
  func.func @transform_1(%arg0: i32) -> (i32, i32) {
    %c0_i32 = arith.constant 0 : i32
    %c0_i32_0 = arith.constant 0 : i32
    return %arg0, %c0_i32 : i32, i32
  }
  func.func @transform_2(%arg0: i32) -> (i32, i32) {
    %c0_i32 = arith.constant 0 : i32
    %c0_i32_0 = arith.constant 0 : i32
    return %arg0, %c0_i32 : i32, i32
  }
  func.func @transform_3(%arg0: i32) -> (i32, i32) {
    %c0_i32 = arith.constant 0 : i32
    %c0_i32_0 = arith.constant 0 : i32
    %c0_i32_1 = arith.constant 0 : i32
    return %c0_i32, %c0_i32_0 : i32, i32
  }
  func.func @transform_4(%arg0: i32) -> (i32, i32) {
    %c0_i32 = arith.constant 0 : i32
    %c0_i32_0 = arith.constant 0 : i32
    return %arg0, %c0_i32 : i32, i32
  }
}

</mosaic_0001>

<llo_original>
// kernel: tpu_custom_call.1
$region0: #{tpu_custom_call.1}
  #allocation0 [shape = 'u32[]', space=smem, size = 0x4, offset = 0x4, fixed_abs, tag = 'smem constant byte address 0x4 - core index']
  #allocation1 [shape = 'u32[144,128]{1,0:T(1,128)}', space=vmem, size = 0x12000, scoped, tag = 'internal scratch']
  %s0 = inlined_call_operand.vmem [shape: f32[128,256], index: 0, kind: input, shape index: {}]
  %s1 = inlined_call_operand.vmem [shape: f32[128,1], index: 1, kind: input, shape index: {}]
  %s2 = inlined_call_operand.vmem [shape: f32[128,1], index: 2, kind: input, shape index: {}]
  %s3 = inlined_call_operand.vmem [shape: f32[64,3], index: 3, kind: input, shape index: {}]
  %s4 = inlined_call_operand.hbm [shape: f32[128,256], index: 4, kind: output, shape index: {}]
  %s5 = sld [smem:[#allocation0]]
  $region49: #{tpu_custom_call.1} parent=0
    _
  %s7 = ssub.s32 1, %s5
  %s8 = scalar_select 0, %s7, %s5
  $region1: #{tpu_custom_call.1} parent=0
    #allocation2 [shape = 'u8[131072]{0}', space=vmem, size = 0x20000, scoped, tag = 'output window, operand 0']
    #allocation3 [shape = 's32[2]{0}', space=sflag, size = 0x8, scoped, tag = 'scoped memory for tpu_custom_call.1']
    %9 = vsyncpa [#allocation3], 0
    %s10 = scalar_lea.sflag [#allocation3], 1
    %11 = vsyncpa %s10, 0
    loop: start=0, step=1, limit=4
    $region2: #{tpu_custom_call.1} parent=1 // loop_pre_header
      _
    $region3: #{tpu_custom_call.1} parent=1 // loop_header
      %s13 = sphi 0, %s17
      %p14 = scmp.ge.s32.totalorder %s13, 4
      %s23 = sphi 0, %s25
      %s26 = sphi 0, %s23
      %s27 = sphi 0, %s26
      %s43 = sphi 0, %s27
      %s49 = sphi 0, %s51
      %s52 = sphi 0, %s49
      %s53 = sphi 0, %s52
      %s69 = sphi 0, %s53
      %s75 = sphi 0, %s77
      %s78 = sphi 0, %s75
      %s79 = sphi 0, %s78
      %s95 = sphi 0, %s79
      %s99 = sphi 0, %s99
      %s101 = sphi 0, %s99
      %s102 = sphi 0, %s101
      %s116 = sphi 0, %s102
      %s122 = sphi 0, %s124
      %s125 = sphi 0, %s122
      %s126 = sphi 0, %s125
      %s142 = sphi 0, %s126
    $region4: #{tpu_custom_call.1} parent=1 // loop_header_branch
      %16 = sbr.rel (%p14) target = $region8
    $region5: #{tpu_custom_call.1} parent=1 // loop_body
      %s18 = ssub.s32 %s13, 1
      %s19 = ssub.s32 %s13, 2
      %s20 = sadd.s32 %s13, 1
      %s21 = ssub.s32 %s13, %s20
      %p22 = scmp.eq.s32.totalorder %s21, 0
      %s24 = sadd.s32 %s23, 1
      %s25 = scalar_select %p22, %s23, %s24
      %p28 = pneg %p22
      %p29 = scmp.eq.s32.totalorder %s13, 1
      %p30 = por %p28, %p29
      %p31 = scmp.ne.s32.totalorder %s23, %s26
      %p32 = scmp.eq.s32.totalorder %s13, 0
      %p33 = por %p31, %p32
      %p34 = scmp.ne.s32.totalorder %s23, %s26
      %p35 = scmp.eq.s32.totalorder %s18, 1
      %p36 = por %p34, %p35
      %p37 = scmp.ne.s32.totalorder %s26, %s27
      %p38 = scmp.eq.s32.totalorder %s18, 0
      %p39 = por %p37, %p38
      %p40 = scmp.ne.s32.totalorder %s26, %s27
      %p41 = scmp.eq.s32.totalorder %s19, 1
      %p42 = por %p40, %p41
      %p44 = scmp.ne.s32.totalorder %s27, %s43
      %p45 = scmp.eq.s32.totalorder %s19, 0
      %p46 = por %p44, %p45
      %s47 = ssub.s32 %s13, %s20
      %p48 = scmp.eq.s32.totalorder %s47, 0
      %s50 = sadd.s32 %s49, 1
      %s51 = scalar_select %p48, %s49, %s50
      %p54 = pneg %p48
      %p55 = scmp.eq.s32.totalorder %s13, 1
      %p56 = por %p54, %p55
      %p57 = scmp.ne.s32.totalorder %s49, %s52
      %p58 = scmp.eq.s32.totalorder %s13, 0
      %p59 = por %p57, %p58
      %p60 = scmp.ne.s32.totalorder %s49, %s52
      %p61 = scmp.eq.s32.totalorder %s18, 1
      %p62 = por %p60, %p61
      %p63 = scmp.ne.s32.totalorder %s52, %s53
      %p64 = scmp.eq.s32.totalorder %s18, 0
      %p65 = por %p63, %p64
      %p66 = scmp.ne.s32.totalorder %s52, %s53
      %p67 = scmp.eq.s32.totalorder %s19, 1
      %p68 = por %p66, %p67
      %p70 = scmp.ne.s32.totalorder %s53, %s69
      %p71 = scmp.eq.s32.totalorder %s19, 0
      %p72 = por %p70, %p71
      %s73 = ssub.s32 %s13, %s20
      %p74 = scmp.eq.s32.totalorder %s73, 0
      %s76 = sadd.s32 %s75, 1
      %s77 = scalar_select %p74, %s75, %s76
      %p80 = pneg %p74
      %p81 = scmp.eq.s32.totalorder %s13, 1
      %p82 = por %p80, %p81
      %p83 = scmp.ne.s32.totalorder %s75, %s78
      %p84 = scmp.eq.s32.totalorder %s13, 0
      %p85 = por %p83, %p84
      %p86 = scmp.ne.s32.totalorder %s75, %s78
      %p87 = scmp.eq.s32.totalorder %s18, 1
      %p88 = por %p86, %p87
      %p89 = scmp.ne.s32.totalorder %s78, %s79
      %p90 = scmp.eq.s32.totalorder %s18, 0
      %p91 = por %p89, %p90
      %p92 = scmp.ne.s32.totalorder %s78, %s79
      %p93 = scmp.eq.s32.totalorder %s19, 1
      %p94 = por %p92, %p93
      %p96 = scmp.ne.s32.totalorder %s79, %s95
      %p97 = scmp.eq.s32.totalorder %s19, 0
      %p98 = por %p96, %p97
      %s100 = sadd.s32 %s99, 1
      %p103 = scmp.eq.s32.totalorder %s13, 1
      %p104 = scmp.ne.s32.totalorder %s99, %s101
      %p105 = scmp.eq.s32.totalorder %s13, 0
      %p106 = por %p104, %p105
      %p107 = scmp.ne.s32.totalorder %s99, %s101
      %p108 = scmp.eq.s32.totalorder %s18, 1
      %p109 = por %p107, %p108
      %p110 = scmp.ne.s32.totalorder %s101, %s102
      %p111 = scmp.eq.s32.totalorder %s18, 0
      %p112 = por %p110, %p111
      %p113 = scmp.ne.s32.totalorder %s101, %s102
      %p114 = scmp.eq.s32.totalorder %s19, 1
      %p115 = por %p113, %p114
      %p117 = scmp.ne.s32.totalorder %s102, %s116
      %p118 = scmp.eq.s32.totalorder %s19, 0
      %p119 = por %p117, %p118
      %s120 = ssub.s32 %s13, %s20
      %p121 = scmp.eq.s32.totalorder %s120, 0
      %s123 = sadd.s32 %s122, 1
      %s124 = scalar_select %p121, %s122, %s123
      %p127 = pneg %p121
      %p128 = scmp.eq.s32.totalorder %s13, 1
      %p129 = por %p127, %p128
      %p130 = scmp.ne.s32.totalorder %s122, %s125
      %p131 = scmp.eq.s32.totalorder %s13, 0
      %p132 = por %p130, %p131
      %p133 = scmp.ne.s32.totalorder %s122, %s125
      %p134 = scmp.eq.s32.totalorder %s18, 1
      %p135 = por %p133, %p134
      %p136 = scmp.ne.s32.totalorder %s125, %s126
      %p137 = scmp.eq.s32.totalorder %s18, 0
      %p138 = por %p136, %p137
      %p139 = scmp.ne.s32.totalorder %s125, %s126
      %p140 = scmp.eq.s32.totalorder %s19, 1
      %p141 = por %p139, %p140
      %p143 = scmp.ne.s32.totalorder %s126, %s142
      %p144 = scmp.eq.s32.totalorder %s19, 0
      %p145 = por %p143, %p144
      %p146 = scmp.le.s32.totalorder 1, %s13
      %p147 = scmp.lt.s32.totalorder %s13, 3
      %p148 = pnand %p146, %p147
      %p149 = pneg %p148
      // Predicated region
      $region9: #{tpu_custom_call.1} parent=5 // pred_check
        _
      $region10: #{tpu_custom_call.1} parent=5 // pred_check_branch
        %151 = sbr.rel (%p148) target = $region12
      $region11: #{tpu_custom_call.1} parent=5 // pred_region
        %s152 = ssub.s32 %s13, 1
        // Predicated region
        $region13: #{tpu_custom_call.1} parent=11 // pred_check
          %p153 = pneg %p112
        $region14: #{tpu_custom_call.1} parent=11 // pred_check_branch
          %155 = sbr.rel (%p153) target = $region16
        $region15: #{tpu_custom_call.1} parent=11 // pred_region
          _
        $region16: #{tpu_custom_call.1} parent=11 // pred_fallthru
          _
      $region12: #{tpu_custom_call.1} parent=5 // pred_fallthru
        _
      %p156 = scmp.lt.s32.totalorder %s13, 2
      // Predicated region
      $region17: #{tpu_custom_call.1} parent=5 // pred_check
        %p157 = pneg %p156
      $region18: #{tpu_custom_call.1} parent=5 // pred_check_branch
        %159 = sbr.rel (%p157) target = $region20
      $region19: #{tpu_custom_call.1} parent=5 // pred_region
        // Predicated region
        $region21: #{tpu_custom_call.1} parent=19 // pred_check
          %p160 = pneg %p33
        $region22: #{tpu_custom_call.1} parent=19 // pred_check_branch
          %162 = sbr.rel (%p160) target = $region24
        $region23: #{tpu_custom_call.1} parent=19 // pred_region
          %s163 = smul.u32 8, %s13
          %p164 = scmp.lt.s32.totalorder %s163, 15
          %s165 = scalar_select %p164, %s163, 15
          %s166 = smul.addr %s165, 2
          %s167 = smul.addr %s166, 8
          %s168 = scalar_lea.vmem %s0, %s167
          %s169 = smul.u32 8, %s13
        $region24: #{tpu_custom_call.1} parent=19 // pred_fallthru
          _
        // Predicated region
        $region25: #{tpu_custom_call.1} parent=19 // pred_check
          %p170 = pneg %p59
        $region26: #{tpu_custom_call.1} parent=19 // pred_check_branch
          %172 = sbr.rel (%p170) target = $region28
        $region27: #{tpu_custom_call.1} parent=19 // pred_region
          %s173 = smul.u32 8, %s13
          %p174 = scmp.lt.s32.totalorder %s173, 15
          %s175 = scalar_select %p174, %s173, 15
          %s176 = smul.addr %s175, 8
          %s177 = scalar_lea.vmem %s1, %s176
          %s178 = smul.u32 8, %s13
        $region28: #{tpu_custom_call.1} parent=19 // pred_fallthru
          _
        // Predicated region
        $region29: #{tpu_custom_call.1} parent=19 // pred_check
          %p179 = pneg %p85
        $region30: #{tpu_custom_call.1} parent=19 // pred_check_branch
          %181 = sbr.rel (%p179) target = $region32
        $region31: #{tpu_custom_call.1} parent=19 // pred_region
          %s182 = smul.u32 8, %s13
          %p183 = scmp.lt.s32.totalorder %s182, 15
          %s184 = scalar_select %p183, %s182, 15
          %s185 = smul.addr %s184, 8
          %s186 = scalar_lea.vmem %s2, %s185
          %s187 = smul.u32 8, %s13
        $region32: #{tpu_custom_call.1} parent=19 // pred_fallthru
          _
      $region20: #{tpu_custom_call.1} parent=5 // pred_fallthru
        _
      %p188 = scmp.le.s32.totalorder 1, %s13
      %p189 = scmp.lt.s32.totalorder %s13, 3
      %p190 = pnand %p188, %p189
      %p191 = pneg %p190
      // Predicated region
      $region33: #{tpu_custom_call.1} parent=5 // pred_check
        _
      $region34: #{tpu_custom_call.1} parent=5 // pred_check_branch
        %193 = sbr.rel (%p190) target = $region36
      $region35: #{tpu_custom_call.1} parent=5 // pred_region
        %s194 = ssub.s32 %s13, 1
        %s195 = smul.u32 8, %s18
        %p196 = scmp.lt.s32.totalorder %s195, 15
        %s197 = scalar_select %p196, %s195, 15
        %s198 = smul.addr %s197, 2
        %s199 = smul.addr %s198, 8
        %s200 = scalar_lea.vmem %s0, %s199
        %p201 = pneg %p39
        %p202 = pneg %p36
        %s203 = smul.u32 8, %s18
        %p204 = scmp.lt.s32.totalorder %s203, 15
        %s205 = scalar_select %p204, %s203, 15
        %s206 = smul.addr %s205, 8
        %s207 = scalar_lea.vmem %s1, %s206
        %p208 = pneg %p65
        %p209 = pneg %p62
        %s210 = smul.u32 8, %s18
        %p211 = scmp.lt.s32.totalorder %s210, 15
        %s212 = scalar_select %p211, %s210, 15
        %s213 = smul.addr %s212, 8
        %s214 = scalar_lea.vmem %s2, %s213
        %p215 = pneg %p91
        %p216 = pneg %p88
        %p217 = pneg %p112
        %p218 = pneg %p109
        %p219 = pneg %p138
        %p220 = pneg %p135
        %s221 = sand.u32 %s125, 1
        %s222 = scalar_lea.sflag [#allocation3], %s221
        %s223 = sand.u32 %s125, 1
        %s224 = smul.addr %s223, 128
        %s225 = scalar_lea.vmem [#allocation2], %s224
        %s226 = smul.u32 8, %s18
        %p227 = scmp.lt.s32.totalorder %s226, 15
        %s228 = scalar_select %p227, %s226, 15
        %s229 = smul.addr %s228, 2
        %s230 = smul.addr %s229, 8
        %s231 = scalar_lea.vmem %s0, %s230
        %s232 = smul.u32 8, %s18
        %s233 = smul.u32 8, %s18
        %p234 = scmp.lt.s32.totalorder %s233, 15
        %s235 = scalar_select %p234, %s233, 15
        %s236 = smul.addr %s235, 8
        %s237 = scalar_lea.vmem %s1, %s236
        %s238 = smul.u32 8, %s18
        %s239 = smul.u32 8, %s18
        %p240 = scmp.lt.s32.totalorder %s239, 15
        %s241 = scalar_select %p240, %s239, 15
        %s242 = smul.addr %s241, 8
        %s243 = scalar_lea.vmem %s2, %s242
        %s244 = smul.u32 8, %s18
        %s245 = smul.u32 8, %s18
        %v246 = vld [vmem:[%s231] sm:$0xff]
        %v247 = vld [vmem:[%s231 + $0x8] sm:$0xff]
        %v248 = vld [vmem:[%s231 + $0x10] sm:$0xff]
        %v249 = vld [vmem:[%s231 + $0x18] sm:$0xff]
        %v250 = vld [vmem:[%s231 + $0x20] sm:$0xff]
        %v251 = vld [vmem:[%s231 + $0x28] sm:$0xff]
        %v252 = vld [vmem:[%s231 + $0x30] sm:$0xff]
        %v253 = vld [vmem:[%s231 + $0x38] sm:$0xff]
        %v254 = vld [vmem:[%s231 + $0x40] sm:$0xff]
        %v255 = vld [vmem:[%s231 + $0x48] sm:$0xff]
        %v256 = vld [vmem:[%s231 + $0x50] sm:$0xff]
        %v257 = vld [vmem:[%s231 + $0x58] sm:$0xff]
        %v258 = vld [vmem:[%s231 + $0x60] sm:$0xff]
        %v259 = vld [vmem:[%s231 + $0x68] sm:$0xff]
        %v260 = vld [vmem:[%s231 + $0x70] sm:$0xff]
        %v261 = vld [vmem:[%s231 + $0x78] sm:$0xff]
        %v262 = vadd.f32 %v246, %v247
        %263 = vadd.xlane.f32.xlu0 %v262
        %v264 = vpop.xlane.xlu0 %263
        %v265 = vadd.f32 %v248, %v249
        %266 = vadd.xlane.f32.xlu0 %v265
        %v267 = vpop.xlane.xlu0 %266
        %v268 = vadd.f32 %v250, %v251
        %269 = vadd.xlane.f32.xlu0 %v268
        %v270 = vpop.xlane.xlu0 %269
        %v271 = vadd.f32 %v252, %v253
        %272 = vadd.xlane.f32.xlu0 %v271
        %v273 = vpop.xlane.xlu0 %272
        %v274 = vadd.f32 %v254, %v255
        %275 = vadd.xlane.f32.xlu0 %v274
        %v276 = vpop.xlane.xlu0 %275
        %v277 = vadd.f32 %v256, %v257
        %278 = vadd.xlane.f32.xlu0 %v277
        %v279 = vpop.xlane.xlu0 %278
        %v280 = vadd.f32 %v258, %v259
        %281 = vadd.xlane.f32.xlu0 %v280
        %v282 = vpop.xlane.xlu0 %281
        %v283 = vadd.f32 %v260, %v261
        %284 = vadd.xlane.f32.xlu0 %v283
        %v285 = vpop.xlane.xlu0 %284
        %v286 = vmul.f32 %v246, %v246
        %v287 = vmul.f32 %v247, %v247
        %v288 = vmul.f32 %v248, %v248
        %v289 = vmul.f32 %v249, %v249
        %v290 = vmul.f32 %v250, %v250
        %v291 = vmul.f32 %v251, %v251
        %v292 = vmul.f32 %v252, %v252
        %v293 = vmul.f32 %v253, %v253
        %v294 = vmul.f32 %v254, %v254
        %v295 = vmul.f32 %v255, %v255
        %v296 = vmul.f32 %v256, %v256
        %v297 = vmul.f32 %v257, %v257
        %v298 = vmul.f32 %v258, %v258
        %v299 = vmul.f32 %v259, %v259
        %v300 = vmul.f32 %v260, %v260
        %v301 = vmul.f32 %v261, %v261
        %v302 = vadd.f32 %v286, %v287
        %303 = vadd.xlane.f32.xlu0 %v302
        %v304 = vpop.xlane.xlu0 %303
        %v305 = vadd.f32 %v288, %v289
        %306 = vadd.xlane.f32.xlu0 %v305
        %v307 = vpop.xlane.xlu0 %306
        %v308 = vadd.f32 %v290, %v291
        %309 = vadd.xlane.f32.xlu0 %v308
        %v310 = vpop.xlane.xlu0 %309
        %v311 = vadd.f32 %v292, %v293
        %312 = vadd.xlane.f32.xlu0 %v311
        %v313 = vpop.xlane.xlu0 %312
        %v314 = vadd.f32 %v294, %v295
        %315 = vadd.xlane.f32.xlu0 %v314
        %v316 = vpop.xlane.xlu0 %315
        %v317 = vadd.f32 %v296, %v297
        %318 = vadd.xlane.f32.xlu0 %v317
        %v319 = vpop.xlane.xlu0 %318
        %v320 = vadd.f32 %v298, %v299
        %321 = vadd.xlane.f32.xlu0 %v320
        %v322 = vpop.xlane.xlu0 %321
        %v323 = vadd.f32 %v300, %v301
        %324 = vadd.xlane.f32.xlu0 %v323
        %v325 = vpop.xlane.xlu0 %324
        %vm326 = vcmask 7168
        %v327 = vsel %vm326, %v264, %v304
        %v328 = vsel %vm326, %v267, %v307
        %v329 = vsel %vm326, %v270, %v310
        %v330 = vsel %vm326, %v273, %v313
        %v331 = vsel %vm326, %v276, %v316
        %v332 = vsel %vm326, %v279, %v319
        %v333 = vsel %vm326, %v282, %v322
        %v334 = vsel %vm326, %v285, %v325
        %v335 = vld [vmem:[%s3] sm:$0xff]
        %v336 = vld [vmem:[%s3 + $0x8] sm:$0xff]
        %v337 = vld [vmem:[%s3 + $0x10] sm:$0xff]
        %v338 = vld [vmem:[%s3 + $0x18] sm:$0xff]
        %v339 = vld [vmem:[%s3 + $0x20] sm:$0xff]
        %v340 = vld [vmem:[%s3 + $0x28] sm:$0xff]
        %v341 = vld [vmem:[%s3 + $0x30] sm:$0xff]
        %v342 = vld [vmem:[%s3 + $0x38] sm:$0xff]
        %v343 = vrot.slane %v327, 7
        %v344 = vrot.slane %v328, 7
        %v345 = vrot.slane %v329, 7
        %v346 = vrot.slane %v330, 7
        %v347 = vrot.slane %v331, 7
        %v348 = vrot.slane %v332, 7
        %v349 = vrot.slane %v333, 7
        %v350 = vrot.slane %v334, 7
        %v351 = vlaneseq
        %v352 = vshrl.u32 %v351, 7
        %vm353 = vcmp.lt.s32.totalorder %v352, 1
        %v354 = vsel %vm353, %v349, %v350
        %v355 = vsel %vm353, %v348, %v349
        %v356 = vsel %vm353, %v347, %v348
        %v357 = vsel %vm353, %v346, %v347
        %v358 = vsel %vm353, %v345, %v346
        %v359 = vsel %vm353, %v344, %v345
        %v360 = vsel %vm353, %v343, %v344
        %v361 = vsel %vm353, %v350, %v343
        %363 = vset.pattern.permute.xlu0 0
        %364 = vperm.xlu0 %363, %v335
        %v365 = vpop.permute.xlu0 %364
        %368 = vset.pattern.permute.xlu0 0
        %369 = vperm.xlu0 %368, %v336
        %v370 = vpop.permute.xlu0 %369
        %373 = vset.pattern.permute.xlu0 0
        %374 = vperm.xlu0 %373, %v337
        %v375 = vpop.permute.xlu0 %374
        %378 = vset.pattern.permute.xlu0 0
        %379 = vperm.xlu0 %378, %v338
        %v380 = vpop.permute.xlu0 %379
        %383 = vset.pattern.permute.xlu0 0
        %384 = vperm.xlu0 %383, %v339
        %v385 = vpop.permute.xlu0 %384
        %388 = vset.pattern.permute.xlu0 0
        %389 = vperm.xlu0 %388, %v340
        %v390 = vpop.permute.xlu0 %389
        %393 = vset.pattern.permute.xlu0 0
        %394 = vperm.xlu0 %393, %v341
        %v395 = vpop.permute.xlu0 %394
        %398 = vset.pattern.permute.xlu0 0
        %399 = vperm.xlu0 %398, %v342
        %v400 = vpop.permute.xlu0 %399
        %v402 = vmul.f32 %v365, %v361
        %v403 = vmul.f32 %v370, %v360
        %v404 = vmul.f32 %v375, %v359
        %v405 = vmul.f32 %v380, %v358
        %v406 = vmul.f32 %v385, %v357
        %v407 = vmul.f32 %v390, %v356
        %v408 = vmul.f32 %v395, %v355
        %v409 = vmul.f32 %v400, %v354
        %410 = vset.pattern.permute.xlu0 1
        %411 = vperm.xlu0 %410, %v335
        %v412 = vpop.permute.xlu0 %411
        %414 = vset.pattern.permute.xlu0 1
        %415 = vperm.xlu0 %414, %v336
        %v416 = vpop.permute.xlu0 %415
        %418 = vset.pattern.permute.xlu0 1
        %419 = vperm.xlu0 %418, %v337
        %v420 = vpop.permute.xlu0 %419
        %422 = vset.pattern.permute.xlu0 1
        %423 = vperm.xlu0 %422, %v338
        %v424 = vpop.permute.xlu0 %423
        %426 = vset.pattern.permute.xlu0 1
        %427 = vperm.xlu0 %426, %v339
        %v428 = vpop.permute.xlu0 %427
        %430 = vset.pattern.permute.xlu0 1
        %431 = vperm.xlu0 %430, %v340
        %v432 = vpop.permute.xlu0 %431
        %434 = vset.pattern.permute.xlu0 1
        %435 = vperm.xlu0 %434, %v341
        %v436 = vpop.permute.xlu0 %435
        %438 = vset.pattern.permute.xlu0 1
        %439 = vperm.xlu0 %438, %v342
        %v440 = vpop.permute.xlu0 %439
        %v442 = vmul.f32 %v412, %v327
        %v443 = vmul.f32 %v416, %v328
        %v444 = vmul.f32 %v420, %v329
        %v445 = vmul.f32 %v424, %v330
        %v446 = vmul.f32 %v428, %v331
        %v447 = vmul.f32 %v432, %v332
        %v448 = vmul.f32 %v436, %v333
        %v449 = vmul.f32 %v440, %v334
        %v450 = vadd.f32 %v402, %v442
        %v451 = vadd.f32 %v403, %v443
        %v452 = vadd.f32 %v404, %v444
        %v453 = vadd.f32 %v405, %v445
        %v454 = vadd.f32 %v406, %v446
        %v455 = vadd.f32 %v407, %v447
        %v456 = vadd.f32 %v408, %v448
        %v457 = vadd.f32 %v409, %v449
        %v458 = vrot.slane %v327, 1
        %v459 = vrot.slane %v328, 1
        %v460 = vrot.slane %v329, 1
        %v461 = vrot.slane %v330, 1
        %v462 = vrot.slane %v331, 1
        %v463 = vrot.slane %v332, 1
        %v464 = vrot.slane %v333, 1
        %v465 = vrot.slane %v334, 1
        %vm466 = vcmp.lt.s32.totalorder %v352, 7
        %v467 = vsel %vm466, %v464, %v465
        %v468 = vsel %vm466, %v463, %v464
        %v469 = vsel %vm466, %v462, %v463
        %v470 = vsel %vm466, %v461, %v462
        %v471 = vsel %vm466, %v460, %v461
        %v472 = vsel %vm466, %v459, %v460
        %v473 = vsel %vm466, %v458, %v459
        %v474 = vsel %vm466, %v465, %v458
        %475 = vset.pattern.permute.xlu0 2
        %476 = vperm.xlu0 %475, %v335
        %v477 = vpop.permute.xlu0 %476
        %479 = vset.pattern.permute.xlu0 2
        %480 = vperm.xlu0 %479, %v336
        %v481 = vpop.permute.xlu0 %480
        %483 = vset.pattern.permute.xlu0 2
        %484 = vperm.xlu0 %483, %v337
        %v485 = vpop.permute.xlu0 %484
        %487 = vset.pattern.permute.xlu0 2
        %488 = vperm.xlu0 %487, %v338
        %v489 = vpop.permute.xlu0 %488
        %491 = vset.pattern.permute.xlu0 2
        %492 = vperm.xlu0 %491, %v339
        %v493 = vpop.permute.xlu0 %492
        %495 = vset.pattern.permute.xlu0 2
        %496 = vperm.xlu0 %495, %v340
        %v497 = vpop.permute.xlu0 %496
        %499 = vset.pattern.permute.xlu0 2
        %500 = vperm.xlu0 %499, %v341
        %v501 = vpop.permute.xlu0 %500
        %503 = vset.pattern.permute.xlu0 2
        %504 = vperm.xlu0 %503, %v342
        %v505 = vpop.permute.xlu0 %504
        %v507 = vmul.f32 %v477, %v473
        %v508 = vmul.f32 %v481, %v472
        %v509 = vmul.f32 %v485, %v471
        %v510 = vmul.f32 %v489, %v470
        %v511 = vmul.f32 %v493, %v469
        %v512 = vmul.f32 %v497, %v468
        %v513 = vmul.f32 %v501, %v467
        %v514 = vmul.f32 %v505, %v474
        %v515 = vadd.f32 %v450, %v507
        %v516 = vadd.f32 %v451, %v508
        %v517 = vadd.f32 %v452, %v509
        %v518 = vadd.f32 %v453, %v510
        %v519 = vadd.f32 %v454, %v511
        %v520 = vadd.f32 %v455, %v512
        %v521 = vadd.f32 %v456, %v513
        %v522 = vadd.f32 %v457, %v514
        %v523 = vmul.f32 %v515, 0.001953125
        %v524 = vmul.f32 %v516, 0.001953125
        %v525 = vmul.f32 %v517, 0.001953125
        %v526 = vmul.f32 %v518, 0.001953125
        %v527 = vmul.f32 %v519, 0.001953125
        %v528 = vmul.f32 %v520, 0.001953125
        %v529 = vmul.f32 %v521, 0.001953125
        %v530 = vmul.f32 %v522, 0.001953125
        %v531 = vmul.f32 %v523, %v523
        %v532 = vmul.f32 %v524, %v524
        %v533 = vmul.f32 %v525, %v525
        %v534 = vmul.f32 %v526, %v526
        %v535 = vmul.f32 %v527, %v527
        %v536 = vmul.f32 %v528, %v528
        %v537 = vmul.f32 %v529, %v529
        %v538 = vmul.f32 %v530, %v530
        %547 = vrot.lane.b32.xlu0 %v531, 1
        %v548 = vpop.permute.xlu0 %547
        %549 = vrot.lane.b32.xlu0 %v532, 1
        %v550 = vpop.permute.xlu0 %549
        %551 = vrot.lane.b32.xlu0 %v533, 1
        %v552 = vpop.permute.xlu0 %551
        %553 = vrot.lane.b32.xlu0 %v534, 1
        %v554 = vpop.permute.xlu0 %553
        %555 = vrot.lane.b32.xlu0 %v535, 1
        %v556 = vpop.permute.xlu0 %555
        %557 = vrot.lane.b32.xlu0 %v536, 1
        %v558 = vpop.permute.xlu0 %557
        %559 = vrot.lane.b32.xlu0 %v537, 1
        %v560 = vpop.permute.xlu0 %559
        %561 = vrot.lane.b32.xlu0 %v538, 1
        %v562 = vpop.permute.xlu0 %561
        %v571 = vsub.f32 %v523, %v548
        %v572 = vsub.f32 %v524, %v550
        %v573 = vsub.f32 %v525, %v552
        %v574 = vsub.f32 %v526, %v554
        %v575 = vsub.f32 %v527, %v556
        %v576 = vsub.f32 %v528, %v558
        %v577 = vsub.f32 %v529, %v560
        %v578 = vsub.f32 %v530, %v562
        %v579 = vmax.f32 %v571, 0.0
        %v580 = vmax.f32 %v572, 0.0
        %v581 = vmax.f32 %v573, 0.0
        %v582 = vmax.f32 %v574, 0.0
        %v583 = vmax.f32 %v575, 0.0
        %v584 = vmax.f32 %v576, 0.0
        %v585 = vmax.f32 %v577, 0.0
        %v586 = vmax.f32 %v578, 0.0
        %v587 = vadd.f32 %v579, 1e-06
        %v588 = vadd.f32 %v580, 1e-06
        %v589 = vadd.f32 %v581, 1e-06
        %v590 = vadd.f32 %v582, 1e-06
        %v591 = vadd.f32 %v583, 1e-06
        %v592 = vadd.f32 %v584, 1e-06
        %v593 = vadd.f32 %v585, 1e-06
        %v594 = vadd.f32 %v586, 1e-06
        %v595 = vrsqrt.pop %v587
        %v596 = vrsqrt.pop %v588
        %v597 = vrsqrt.pop %v589
        %v598 = vrsqrt.pop %v590
        %v599 = vrsqrt.pop %v591
        %v600 = vrsqrt.pop %v592
        %v601 = vrsqrt.pop %v593
        %v602 = vrsqrt.pop %v594
        %v603 = vld [vmem:[%s237] sm:$0xff]
        %v604 = vld [vmem:[%s237 + $0x8] sm:$0xff]
        %v605 = vld [vmem:[%s237 + $0x10] sm:$0xff]
        %v606 = vld [vmem:[%s237 + $0x18] sm:$0xff]
        %v607 = vld [vmem:[%s237 + $0x20] sm:$0xff]
        %v608 = vld [vmem:[%s237 + $0x28] sm:$0xff]
        %v609 = vld [vmem:[%s237 + $0x30] sm:$0xff]
        %v610 = vld [vmem:[%s237 + $0x38] sm:$0xff]
        %v611 = vld [vmem:[%s243] sm:$0xff]
        %v612 = vld [vmem:[%s243 + $0x8] sm:$0xff]
        %v613 = vld [vmem:[%s243 + $0x10] sm:$0xff]
        %v614 = vld [vmem:[%s243 + $0x18] sm:$0xff]
        %v615 = vld [vmem:[%s243 + $0x20] sm:$0xff]
        %v616 = vld [vmem:[%s243 + $0x28] sm:$0xff]
        %v617 = vld [vmem:[%s243 + $0x30] sm:$0xff]
        %v618 = vld [vmem:[%s243 + $0x38] sm:$0xff]
        %627 = vrot.lane.b32.xlu0 %v595, 127
        %v628 = vpop.permute.xlu0 %627
        %629 = vrot.lane.b32.xlu0 %v596, 127
        %v630 = vpop.permute.xlu0 %629
        %631 = vrot.lane.b32.xlu0 %v597, 127
        %v632 = vpop.permute.xlu0 %631
        %633 = vrot.lane.b32.xlu0 %v598, 127
        %v634 = vpop.permute.xlu0 %633
        %635 = vrot.lane.b32.xlu0 %v599, 127
        %v636 = vpop.permute.xlu0 %635
        %637 = vrot.lane.b32.xlu0 %v600, 127
        %v638 = vpop.permute.xlu0 %637
        %639 = vrot.lane.b32.xlu0 %v601, 127
        %v640 = vpop.permute.xlu0 %639
        %641 = vrot.lane.b32.xlu0 %v602, 127
        %v642 = vpop.permute.xlu0 %641
        %v651 = vmul.f32 %v603, %v628
        %v652 = vmul.f32 %v604, %v630
        %v653 = vmul.f32 %v605, %v632
        %v654 = vmul.f32 %v606, %v634
        %v655 = vmul.f32 %v607, %v636
        %v656 = vmul.f32 %v608, %v638
        %v657 = vmul.f32 %v609, %v640
        %v658 = vmul.f32 %v610, %v642
        %v659 = vmul.f32 %v523, %v651
        %v660 = vmul.f32 %v524, %v652
        %v661 = vmul.f32 %v525, %v653
        %v662 = vmul.f32 %v526, %v654
        %v663 = vmul.f32 %v527, %v655
        %v664 = vmul.f32 %v528, %v656
        %v665 = vmul.f32 %v529, %v657
        %v666 = vmul.f32 %v530, %v658
        %v667 = vsub.f32 %v611, %v659
        %v668 = vsub.f32 %v612, %v660
        %v669 = vsub.f32 %v613, %v661
        %v670 = vsub.f32 %v614, %v662
        %v671 = vsub.f32 %v615, %v663
        %v672 = vsub.f32 %v616, %v664
        %v673 = vsub.f32 %v617, %v665
        %v674 = vsub.f32 %v618, %v666
        %676 = vset.pattern.permute.xlu0 0
        %677 = vperm.xlu0 %676, %v651
        %v678 = vpop.permute.xlu0 %677
        %681 = vset.pattern.permute.xlu0 0
        %682 = vperm.xlu0 %681, %v652
        %v683 = vpop.permute.xlu0 %682
        %686 = vset.pattern.permute.xlu0 0
        %687 = vperm.xlu0 %686, %v653
        %v688 = vpop.permute.xlu0 %687
        %691 = vset.pattern.permute.xlu0 0
        %692 = vperm.xlu0 %691, %v654
        %v693 = vpop.permute.xlu0 %692
        %696 = vset.pattern.permute.xlu0 0
        %697 = vperm.xlu0 %696, %v655
        %v698 = vpop.permute.xlu0 %697
        %701 = vset.pattern.permute.xlu0 0
        %702 = vperm.xlu0 %701, %v656
        %v703 = vpop.permute.xlu0 %702
        %706 = vset.pattern.permute.xlu0 0
        %707 = vperm.xlu0 %706, %v657
        %v708 = vpop.permute.xlu0 %707
        %711 = vset.pattern.permute.xlu0 0
        %712 = vperm.xlu0 %711, %v658
        %v713 = vpop.permute.xlu0 %712
        %v715 = vmul.f32 %v246, %v678
        %v716 = vmul.f32 %v247, %v678
        %v717 = vmul.f32 %v248, %v683
        %v718 = vmul.f32 %v249, %v683
        %v719 = vmul.f32 %v250, %v688
        %v720 = vmul.f32 %v251, %v688
        %v721 = vmul.f32 %v252, %v693
        %v722 = vmul.f32 %v253, %v693
        %v723 = vmul.f32 %v254, %v698
        %v724 = vmul.f32 %v255, %v698
        %v725 = vmul.f32 %v256, %v703
        %v726 = vmul.f32 %v257, %v703
        %v727 = vmul.f32 %v258, %v708
        %v728 = vmul.f32 %v259, %v708
        %v729 = vmul.f32 %v260, %v713
        %v730 = vmul.f32 %v261, %v713
        %732 = vset.pattern.permute.xlu0 0
        %733 = vperm.xlu0 %732, %v667
        %v734 = vpop.permute.xlu0 %733
        %737 = vset.pattern.permute.xlu0 0
        %738 = vperm.xlu0 %737, %v668
        %v739 = vpop.permute.xlu0 %738
        %742 = vset.pattern.permute.xlu0 0
        %743 = vperm.xlu0 %742, %v669
        %v744 = vpop.permute.xlu0 %743
        %747 = vset.pattern.permute.xlu0 0
        %748 = vperm.xlu0 %747, %v670
        %v749 = vpop.permute.xlu0 %748
        %752 = vset.pattern.permute.xlu0 0
        %753 = vperm.xlu0 %752, %v671
        %v754 = vpop.permute.xlu0 %753
        %757 = vset.pattern.permute.xlu0 0
        %758 = vperm.xlu0 %757, %v672
        %v759 = vpop.permute.xlu0 %758
        %762 = vset.pattern.permute.xlu0 0
        %763 = vperm.xlu0 %762, %v673
        %v764 = vpop.permute.xlu0 %763
        %767 = vset.pattern.permute.xlu0 0
        %768 = vperm.xlu0 %767, %v674
        %v769 = vpop.permute.xlu0 %768
        %v771 = vadd.f32 %v715, %v734
        %v772 = vadd.f32 %v716, %v734
        %v773 = vadd.f32 %v717, %v739
        %v774 = vadd.f32 %v718, %v739
        %v775 = vadd.f32 %v719, %v744
        %v776 = vadd.f32 %v720, %v744
        %v777 = vadd.f32 %v721, %v749
        %v778 = vadd.f32 %v722, %v749
        %v779 = vadd.f32 %v723, %v754
        %v780 = vadd.f32 %v724, %v754
        %v781 = vadd.f32 %v725, %v759
        %v782 = vadd.f32 %v726, %v759
        %v783 = vadd.f32 %v727, %v764
        %v784 = vadd.f32 %v728, %v764
        %v785 = vadd.f32 %v729, %v769
        %v786 = vadd.f32 %v730, %v769
        %787 = vst [vmem:[%s225] sm:$0xff] %v771
        %788 = vst [vmem:[%s225 + $0x8] sm:$0xff] %v772
        %789 = vst [vmem:[%s225 + $0x10] sm:$0xff] %v773
        %790 = vst [vmem:[%s225 + $0x18] sm:$0xff] %v774
        %791 = vst [vmem:[%s225 + $0x20] sm:$0xff] %v775
        %792 = vst [vmem:[%s225 + $0x28] sm:$0xff] %v776
        %793 = vst [vmem:[%s225 + $0x30] sm:$0xff] %v777
        %794 = vst [vmem:[%s225 + $0x38] sm:$0xff] %v778
        %795 = vst [vmem:[%s225 + $0x40] sm:$0xff] %v779
        %796 = vst [vmem:[%s225 + $0x48] sm:$0xff] %v780
        %797 = vst [vmem:[%s225 + $0x50] sm:$0xff] %v781
        %798 = vst [vmem:[%s225 + $0x58] sm:$0xff] %v782
        %799 = vst [vmem:[%s225 + $0x60] sm:$0xff] %v783
        %800 = vst [vmem:[%s225 + $0x68] sm:$0xff] %v784
        %801 = vst [vmem:[%s225 + $0x70] sm:$0xff] %v785
        %802 = vst [vmem:[%s225 + $0x78] sm:$0xff] %v786
        %s803 = sand.u32 %s125, 1
        %s804 = scalar_lea.sflag [#allocation3], %s803
        %s805 = sand.u32 %s125, 1
        %s806 = smul.addr %s805, 128
        %s807 = scalar_lea.vmem [#allocation2], %s806
        // Predicated region
        $region37: #{tpu_custom_call.1} parent=35 // pred_check
          %p808 = pneg %p135
        $region38: #{tpu_custom_call.1} parent=35 // pred_check_branch
          %810 = sbr.rel (%p808) target = $region40
        $region39: #{tpu_custom_call.1} parent=35 // pred_region
          %s811 = smul.u32 8, %s18
          %s813 = ssub.s32 2048, 2048
          %814 = vsyncadd %s804, %s813
          %s815 = smul.addr %s811, 2
          %s816 = smul.addr %s815, 128
          %s817 = scalar_lea.hbm %s4, %s816
          %s818 = sshll.u32 %s807, 4
          %s819 = int_to_ptr.vmem [resolvable:$true] %s818
          %824 = dma.vmem_to_hbm [thread:$0]  %s819, 2048, %s817, %s804, 256, 256, 16
        $region40: #{tpu_custom_call.1} parent=35 // pred_fallthru
          _
      $region36: #{tpu_custom_call.1} parent=5 // pred_fallthru
        _
      %p825 = scmp.le.s32.totalorder 2, %s13
      // Predicated region
      $region41: #{tpu_custom_call.1} parent=5 // pred_check
        %p826 = pneg %p825
      $region42: #{tpu_custom_call.1} parent=5 // pred_check_branch
        %828 = sbr.rel (%p826) target = $region44
      $region43: #{tpu_custom_call.1} parent=5 // pred_region
        %s829 = ssub.s32 %s13, 2
        // Predicated region
        $region45: #{tpu_custom_call.1} parent=43 // pred_check
          %p830 = pneg %p141
        $region46: #{tpu_custom_call.1} parent=43 // pred_check_branch
          %832 = sbr.rel (%p830) target = $region48
        $region47: #{tpu_custom_call.1} parent=43 // pred_region
          %s833 = sand.u32 %s126, 1
          %s834 = scalar_lea.sflag [#allocation3], %s833
          %s835 = sand.u32 %s126, 1
          %s836 = smul.addr %s835, 128
          %s837 = scalar_lea.vmem [#allocation2], %s836
          %838 = dma.done %s834, 2048
        $region48: #{tpu_custom_call.1} parent=43 // pred_fallthru
          _
      $region44: #{tpu_custom_call.1} parent=5 // pred_fallthru
        _
    $region6: #{tpu_custom_call.1} parent=1 // loop_footer
      %s17 = sadd.s32 1, %s13
    $region7: #{tpu_custom_call.1} parent=1 // loop_footer_branch
      %12 = sbr.rel target = $region3
    $region8: #{tpu_custom_call.1} parent=1 // loop_exit
      _
    %839 = vsyncpa [#allocation3], 1
    %s840 = scalar_lea.sflag [#allocation3], 1
    %841 = vsyncpa %s840, 1

</llo_original>
